<compile_context>
chip_gen: v7x
topology: tpu7x:2x2x1
jax: 0.10.0
libtpu: 0.0.40
codegen_flags: <defaults>
</compile_context>

<pallas_src>
import jax
import jax.numpy as jnp
from jax.experimental import pallas as pl
from jax.experimental.pallas import tpu as pltpu

_LANE = 128
_TNS_CAP = 2048  # sublane blocks / grid step -> ~4 MiB HBM traffic, ~14 MiB VMEM


def _round_up(a, b):
    return (a + b - 1) // b * b


def _mlp_kernel(x_ref, w1_ref, b1_ref, w2_ref, b2_ref, o_ref):
    """x_ref: (C_in, tn_s, 128) VMEM; w1/b1/w2/b2 in SMEM; o_ref: (tn_s, 128) VMEM."""
    h_dim, c_in = w1_ref.shape
    acc = None
    for j in range(h_dim):                                     # H = 4, unrolled
        # Init from bias + first FMA term (no zero broadcasts).
        hj = w1_ref[j, 0] * x_ref[0].astype(jnp.float32) + b1_ref[j]
        for k in range(1, c_in):                               # C_in = 3, unrolled VPU FMAs
            hj = hj + w1_ref[j, k] * x_ref[k].astype(jnp.float32)
        hj = jnp.maximum(hj, 0.0)                              # ReLU
        t = w2_ref[0, j] * hj
        acc = (t + b2_ref[0]) if acc is None else (acc + t)    # fold b2 into first term
    # sigmoid(z) == 0.5*tanh(0.5*z) + 0.5: tanh runs on the EUP (free slot) and is
    # accurate to f32 rounding, unlike approx reciprocal.
    o_ref[...] = (0.5 * jnp.tanh(0.5 * acc) + 0.5).astype(o_ref.dtype)


@jax.jit
def mlp_forward(x, w1, b1, w2, b2):
    """y = sigmoid(relu(x @ w1.T + b1) @ w2.T + b2), x: (N, C_in) -> (N, 1)."""
    n, c_in = x.shape
    h_dim = w1.shape[0]
    assert w1.shape == (h_dim, c_in)
    assert w2.shape == (1, h_dim) and b1.shape == (h_dim,) and b2.shape == (1,)

    # One fused pad+transpose pass to channel-major, then a free reshape to
    # the sublane+lane dense 3D layout (C_in, n_blocks, 128).
    n_pad = max(_round_up(n, _LANE), _LANE)
    n_blocks = n_pad // _LANE
    x_p = x if n_pad == n else jnp.pad(x, ((0, n_pad - n), (0, 0)))
    xt = x_p.T.reshape(c_in, n_blocks, _LANE)

    # Tile selection: as large as possible (amortize ~0.35us/step overhead),
    # >=2 grid steps when possible (v7x megacore), capped for VMEM.
    if n_blocks <= 8:
        tn_s = n_blocks
    else:
        tn_s = min(_TNS_CAP, _round_up((n_blocks + 1) // 2, 8))
    grid = ((n_blocks + tn_s - 1) // tn_s,)  # cdiv: ragged last block masked by Pallas

    smem = pl.BlockSpec(memory_space=pltpu.MemorySpace.SMEM)

    out = pl.pallas_call(
        _mlp_kernel,
        out_shape=jax.ShapeDtypeStruct((n_blocks, _LANE), x.dtype),
        grid=grid,
        in_specs=[
            pl.BlockSpec((c_in, tn_s, _LANE), lambda i: (0, i, 0)),  # x tile (dense)
            smem,                                                    # W1 (H, C_in)
            smem,                                                    # b1 (H,)
            smem,                                                    # W2 (1, H)
            smem,                                                    # b2 (1,)
        ],
        out_specs=pl.BlockSpec((tn_s, _LANE), lambda i: (i, 0)),     # lane-dense output
        compiler_params=pltpu.CompilerParams(
            dimension_semantics=("parallel",),
            vmem_limit_bytes=32 * 1024 * 1024,
        ),
    )(xt, w1, b1, w2, b2)

    # (n_blocks, 128) -> (n_pad,) is the original batch order; slice and add unit dim.
    return out.reshape(n_pad, 1)[:n]


class LinearNNComplex:
    """JAX/Pallas mirror of the PyTorch LinearNNComplex module (real-valued)."""

    def __init__(self, key, l=4, in_channels=3, out_channels=1, dtype=jnp.float32):
        k1w, k1b, k2w, k2b = jax.random.split(key, 4)
        bound1 = 1.0 / jnp.sqrt(jnp.float32(in_channels))
        bound2 = 1.0 / jnp.sqrt(jnp.float32(l))
        # PyTorch Linear stores weight as (out, in); kernel consumes it directly.
        self.w1 = jax.random.uniform(k1w, (l, in_channels), dtype=dtype,
                                     minval=-bound1, maxval=bound1)
        self.b1 = jax.random.uniform(k1b, (l,), dtype=dtype,
                                     minval=-bound1, maxval=bound1)
        self.w2 = jax.random.uniform(k2w, (out_channels, l), dtype=dtype,
                                     minval=-bound2, maxval=bound2)
        self.b2 = jax.random.uniform(k2b, (out_channels,), dtype=dtype,
                                     minval=-bound2, maxval=bound2)

    def __call__(self, x):
        return mlp_forward(x, self.w1, self.b1, self.w2, self.b2)


if __name__ == "__main__":
    key = jax.random.PRNGKey(0)
    k_param, k_x1, k_x2 = jax.random.split(key, 3)

    model = LinearNNComplex(k_param, l=4)

    def ref_fwd(x):
        h = jnp.maximum(x @ model.w1.T + model.b1, 0.0)
        z = h @ model.w2.T + model.b2
        return 1.0 / (1.0 + jnp.exp(-z))

    # Small batch implied by the module: x (N, 3) -> y (N, 1).
    x1 = jax.random.normal(k_x1, (8, 3), dtype=jnp.float32)
    y1 = jax.block_until_ready(model(x1))
    assert y1.shape == (8, 1)
    assert jnp.allclose(y1, ref_fwd(x1), atol=1e-5, rtol=1e-5)

    # Exercise the pad + cdiv-grid + ragged-last-block path (still tiny).
    x2 = jax.random.normal(k_x2, (2500, 3), dtype=jnp.float32)
    y2 = jax.block_until_ready(model(x2))
    assert y2.shape == (2500, 1)
    assert jnp.allclose(y2, ref_fwd(x2), atol=1e-5, rtol=1e-5)

    print("KERNEL_OK")
</pallas_src>

<mosaic_0001>
module attributes {stable_mosaic.version = 11 : i64} {
  func.func @_mlp_kernel(%arg0: i32, %arg1: memref<3x1x128xf32, #tpu.memory_space<vmem>>, %arg2: memref<4x3xf32, #tpu.memory_space<smem>>, %arg3: memref<4xf32, #tpu.memory_space<smem>>, %arg4: memref<1x4xf32, #tpu.memory_space<smem>>, %arg5: memref<1xf32, #tpu.memory_space<smem>>, %arg6: memref<1x128xf32, #tpu.memory_space<vmem>>) attributes {dimension_semantics = [#tpu.dimension_semantics<parallel>], iteration_bounds = array<i64: 1>, scalar_prefetch = 0 : i64, scratch_operands = 0 : i64, tpu.core_type = #tpu.core_type<tc>, window_params = [{transform_indices = @transform_0, window_bounds = array<i64: 3, 1, 128>}, {transform_indices = @transform_1, window_bounds = array<i64: 4, 3>}, {transform_indices = @transform_2, window_bounds = array<i64: 4>}, {transform_indices = @transform_3, window_bounds = array<i64: 1, 4>}, {transform_indices = @transform_4, window_bounds = array<i64: 1>}, {transform_indices = @transform_5, window_bounds = array<i64: 1, 128>}]} {
    %c0 = arith.constant 0 : index
    %c0_0 = arith.constant 0 : index
    %0 = memref.load %arg2[%c0, %c0_0] : memref<4x3xf32, #tpu.memory_space<smem>>
    %c0_1 = arith.constant 0 : index
    %c0_2 = arith.constant 0 : index
    %c0_3 = arith.constant 0 : index
    %1 = vector.load %arg1[%c0_1, %c0_2, %c0_3] : memref<3x1x128xf32, #tpu.memory_space<vmem>>, vector<1x1x128xf32>
    %2 = vector.shape_cast %1 : vector<1x1x128xf32> to vector<1x128xf32>
    %3 = vector.broadcast %0 : f32 to vector<1x128xf32>
    %4 = arith.mulf %3, %2 : vector<1x128xf32>
    %c0_4 = arith.constant 0 : index
    %5 = memref.load %arg3[%c0_4] : memref<4xf32, #tpu.memory_space<smem>>
    %6 = vector.broadcast %5 : f32 to vector<1x128xf32>
    %7 = arith.addf %4, %6 : vector<1x128xf32>
    %c0_5 = arith.constant 0 : index
    %c1 = arith.constant 1 : index
    %8 = memref.load %arg2[%c0_5, %c1] : memref<4x3xf32, #tpu.memory_space<smem>>
    %c1_6 = arith.constant 1 : index
    %c0_7 = arith.constant 0 : index
    %c0_8 = arith.constant 0 : index
    %9 = vector.load %arg1[%c1_6, %c0_7, %c0_8] : memref<3x1x128xf32, #tpu.memory_space<vmem>>, vector<1x1x128xf32>
    %10 = vector.shape_cast %9 : vector<1x1x128xf32> to vector<1x128xf32>
    %11 = vector.broadcast %8 : f32 to vector<1x128xf32>
    %12 = arith.mulf %11, %10 : vector<1x128xf32>
    %13 = arith.addf %7, %12 : vector<1x128xf32>
    %c0_9 = arith.constant 0 : index
    %c2 = arith.constant 2 : index
    %14 = memref.load %arg2[%c0_9, %c2] : memref<4x3xf32, #tpu.memory_space<smem>>
    %c2_10 = arith.constant 2 : index
    %c0_11 = arith.constant 0 : index
    %c0_12 = arith.constant 0 : index
    %15 = vector.load %arg1[%c2_10, %c0_11, %c0_12] : memref<3x1x128xf32, #tpu.memory_space<vmem>>, vector<1x1x128xf32>
    %16 = vector.shape_cast %15 : vector<1x1x128xf32> to vector<1x128xf32>
    %17 = vector.broadcast %14 : f32 to vector<1x128xf32>
    %18 = arith.mulf %17, %16 : vector<1x128xf32>
    %19 = arith.addf %13, %18 : vector<1x128xf32>
    %cst = arith.constant 0.000000e+00 : f32
    %20 = vector.broadcast %cst : f32 to vector<1x128xf32>
    %21 = arith.maximumf %19, %20 : vector<1x128xf32>
    %c0_13 = arith.constant 0 : index
    %c0_14 = arith.constant 0 : index
    %22 = memref.load %arg4[%c0_13, %c0_14] : memref<1x4xf32, #tpu.memory_space<smem>>
    %23 = vector.broadcast %22 : f32 to vector<1x128xf32>
    %24 = arith.mulf %23, %21 : vector<1x128xf32>
    %c0_15 = arith.constant 0 : index
    %25 = memref.load %arg5[%c0_15] : memref<1xf32, #tpu.memory_space<smem>>
    %26 = vector.broadcast %25 : f32 to vector<1x128xf32>
    %27 = arith.addf %24, %26 : vector<1x128xf32>
    %c1_16 = arith.constant 1 : index
    %c0_17 = arith.constant 0 : index
    %28 = memref.load %arg2[%c1_16, %c0_17] : memref<4x3xf32, #tpu.memory_space<smem>>
    %c0_18 = arith.constant 0 : index
    %c0_19 = arith.constant 0 : index
    %c0_20 = arith.constant 0 : index
    %29 = vector.load %arg1[%c0_18, %c0_19, %c0_20] : memref<3x1x128xf32, #tpu.memory_space<vmem>>, vector<1x1x128xf32>
    %30 = vector.shape_cast %29 : vector<1x1x128xf32> to vector<1x128xf32>
    %31 = vector.broadcast %28 : f32 to vector<1x128xf32>
    %32 = arith.mulf %31, %30 : vector<1x128xf32>
    %c1_21 = arith.constant 1 : index
    %33 = memref.load %arg3[%c1_21] : memref<4xf32, #tpu.memory_space<smem>>
    %34 = vector.broadcast %33 : f32 to vector<1x128xf32>
    %35 = arith.addf %32, %34 : vector<1x128xf32>
    %c1_22 = arith.constant 1 : index
    %c1_23 = arith.constant 1 : index
    %36 = memref.load %arg2[%c1_22, %c1_23] : memref<4x3xf32, #tpu.memory_space<smem>>
    %c1_24 = arith.constant 1 : index
    %c0_25 = arith.constant 0 : index
    %c0_26 = arith.constant 0 : index
    %37 = vector.load %arg1[%c1_24, %c0_25, %c0_26] : memref<3x1x128xf32, #tpu.memory_space<vmem>>, vector<1x1x128xf32>
    %38 = vector.shape_cast %37 : vector<1x1x128xf32> to vector<1x128xf32>
    %39 = vector.broadcast %36 : f32 to vector<1x128xf32>
    %40 = arith.mulf %39, %38 : vector<1x128xf32>
    %41 = arith.addf %35, %40 : vector<1x128xf32>
    %c1_27 = arith.constant 1 : index
    %c2_28 = arith.constant 2 : index
    %42 = memref.load %arg2[%c1_27, %c2_28] : memref<4x3xf32, #tpu.memory_space<smem>>
    %c2_29 = arith.constant 2 : index
    %c0_30 = arith.constant 0 : index
    %c0_31 = arith.constant 0 : index
    %43 = vector.load %arg1[%c2_29, %c0_30, %c0_31] : memref<3x1x128xf32, #tpu.memory_space<vmem>>, vector<1x1x128xf32>
    %44 = vector.shape_cast %43 : vector<1x1x128xf32> to vector<1x128xf32>
    %45 = vector.broadcast %42 : f32 to vector<1x128xf32>
    %46 = arith.mulf %45, %44 : vector<1x128xf32>
    %47 = arith.addf %41, %46 : vector<1x128xf32>
    %cst_32 = arith.constant 0.000000e+00 : f32
    %48 = vector.broadcast %cst_32 : f32 to vector<1x128xf32>
    %49 = arith.maximumf %47, %48 : vector<1x128xf32>
    %c0_33 = arith.constant 0 : index
    %c1_34 = arith.constant 1 : index
    %50 = memref.load %arg4[%c0_33, %c1_34] : memref<1x4xf32, #tpu.memory_space<smem>>
    %51 = vector.broadcast %50 : f32 to vector<1x128xf32>
    %52 = arith.mulf %51, %49 : vector<1x128xf32>
    %53 = arith.addf %27, %52 : vector<1x128xf32>
    %c2_35 = arith.constant 2 : index
    %c0_36 = arith.constant 0 : index
    %54 = memref.load %arg2[%c2_35, %c0_36] : memref<4x3xf32, #tpu.memory_space<smem>>
    %c0_37 = arith.constant 0 : index
    %c0_38 = arith.constant 0 : index
    %c0_39 = arith.constant 0 : index
    %55 = vector.load %arg1[%c0_37, %c0_38, %c0_39] : memref<3x1x128xf32, #tpu.memory_space<vmem>>, vector<1x1x128xf32>
    %56 = vector.shape_cast %55 : vector<1x1x128xf32> to vector<1x128xf32>
    %57 = vector.broadcast %54 : f32 to vector<1x128xf32>
    %58 = arith.mulf %57, %56 : vector<1x128xf32>
    %c2_40 = arith.constant 2 : index
    %59 = memref.load %arg3[%c2_40] : memref<4xf32, #tpu.memory_space<smem>>
    %60 = vector.broadcast %59 : f32 to vector<1x128xf32>
    %61 = arith.addf %58, %60 : vector<1x128xf32>
    %c2_41 = arith.constant 2 : index
    %c1_42 = arith.constant 1 : index
    %62 = memref.load %arg2[%c2_41, %c1_42] : memref<4x3xf32, #tpu.memory_space<smem>>
    %c1_43 = arith.constant 1 : index
    %c0_44 = arith.constant 0 : index
    %c0_45 = arith.constant 0 : index
    %63 = vector.load %arg1[%c1_43, %c0_44, %c0_45] : memref<3x1x128xf32, #tpu.memory_space<vmem>>, vector<1x1x128xf32>
    %64 = vector.shape_cast %63 : vector<1x1x128xf32> to vector<1x128xf32>
    %65 = vector.broadcast %62 : f32 to vector<1x128xf32>
    %66 = arith.mulf %65, %64 : vector<1x128xf32>
    %67 = arith.addf %61, %66 : vector<1x128xf32>
    %c2_46 = arith.constant 2 : index
    %c2_47 = arith.constant 2 : index
    %68 = memref.load %arg2[%c2_46, %c2_47] : memref<4x3xf32, #tpu.memory_space<smem>>
    %c2_48 = arith.constant 2 : index
    %c0_49 = arith.constant 0 : index
    %c0_50 = arith.constant 0 : index
    %69 = vector.load %arg1[%c2_48, %c0_49, %c0_50] : memref<3x1x128xf32, #tpu.memory_space<vmem>>, vector<1x1x128xf32>
    %70 = vector.shape_cast %69 : vector<1x1x128xf32> to vector<1x128xf32>
    %71 = vector.broadcast %68 : f32 to vector<1x128xf32>
    %72 = arith.mulf %71, %70 : vector<1x128xf32>
    %73 = arith.addf %67, %72 : vector<1x128xf32>
    %cst_51 = arith.constant 0.000000e+00 : f32
    %74 = vector.broadcast %cst_51 : f32 to vector<1x128xf32>
    %75 = arith.maximumf %73, %74 : vector<1x128xf32>
    %c0_52 = arith.constant 0 : index
    %c2_53 = arith.constant 2 : index
    %76 = memref.load %arg4[%c0_52, %c2_53] : memref<1x4xf32, #tpu.memory_space<smem>>
    %77 = vector.broadcast %76 : f32 to vector<1x128xf32>
    %78 = arith.mulf %77, %75 : vector<1x128xf32>
    %79 = arith.addf %53, %78 : vector<1x128xf32>
    %c3 = arith.constant 3 : index
    %c0_54 = arith.constant 0 : index
    %80 = memref.load %arg2[%c3, %c0_54] : memref<4x3xf32, #tpu.memory_space<smem>>
    %c0_55 = arith.constant 0 : index
    %c0_56 = arith.constant 0 : index
    %c0_57 = arith.constant 0 : index
    %81 = vector.load %arg1[%c0_55, %c0_56, %c0_57] : memref<3x1x128xf32, #tpu.memory_space<vmem>>, vector<1x1x128xf32>
    %82 = vector.shape_cast %81 : vector<1x1x128xf32> to vector<1x128xf32>
    %83 = vector.broadcast %80 : f32 to vector<1x128xf32>
    %84 = arith.mulf %83, %82 : vector<1x128xf32>
    %c3_58 = arith.constant 3 : index
    %85 = memref.load %arg3[%c3_58] : memref<4xf32, #tpu.memory_space<smem>>
    %86 = vector.broadcast %85 : f32 to vector<1x128xf32>
    %87 = arith.addf %84, %86 : vector<1x128xf32>
    %c3_59 = arith.constant 3 : index
    %c1_60 = arith.constant 1 : index
    %88 = memref.load %arg2[%c3_59, %c1_60] : memref<4x3xf32, #tpu.memory_space<smem>>
    %c1_61 = arith.constant 1 : index
    %c0_62 = arith.constant 0 : index
    %c0_63 = arith.constant 0 : index
    %89 = vector.load %arg1[%c1_61, %c0_62, %c0_63] : memref<3x1x128xf32, #tpu.memory_space<vmem>>, vector<1x1x128xf32>
    %90 = vector.shape_cast %89 : vector<1x1x128xf32> to vector<1x128xf32>
    %91 = vector.broadcast %88 : f32 to vector<1x128xf32>
    %92 = arith.mulf %91, %90 : vector<1x128xf32>
    %93 = arith.addf %87, %92 : vector<1x128xf32>
    %c3_64 = arith.constant 3 : index
    %c2_65 = arith.constant 2 : index
    %94 = memref.load %arg2[%c3_64, %c2_65] : memref<4x3xf32, #tpu.memory_space<smem>>
    %c2_66 = arith.constant 2 : index
    %c0_67 = arith.constant 0 : index
    %c0_68 = arith.constant 0 : index
    %95 = vector.load %arg1[%c2_66, %c0_67, %c0_68] : memref<3x1x128xf32, #tpu.memory_space<vmem>>, vector<1x1x128xf32>
    %96 = vector.shape_cast %95 : vector<1x1x128xf32> to vector<1x128xf32>
    %97 = vector.broadcast %94 : f32 to vector<1x128xf32>
    %98 = arith.mulf %97, %96 : vector<1x128xf32>
    %99 = arith.addf %93, %98 : vector<1x128xf32>
    %cst_69 = arith.constant 0.000000e+00 : f32
    %100 = vector.broadcast %cst_69 : f32 to vector<1x128xf32>
    %101 = arith.maximumf %99, %100 : vector<1x128xf32>
    %c0_70 = arith.constant 0 : index
    %c3_71 = arith.constant 3 : index
    %102 = memref.load %arg4[%c0_70, %c3_71] : memref<1x4xf32, #tpu.memory_space<smem>>
    %103 = vector.broadcast %102 : f32 to vector<1x128xf32>
    %104 = arith.mulf %103, %101 : vector<1x128xf32>
    %105 = arith.addf %79, %104 : vector<1x128xf32>
    %cst_72 = arith.constant 5.000000e-01 : f32
    %106 = vector.broadcast %cst_72 : f32 to vector<1x128xf32>
    %107 = arith.mulf %106, %105 : vector<1x128xf32>
    %108 = math.tanh %107 : vector<1x128xf32>
    %cst_73 = arith.constant 5.000000e-01 : f32
    %109 = vector.broadcast %cst_73 : f32 to vector<1x128xf32>
    %110 = arith.mulf %109, %108 : vector<1x128xf32>
    %cst_74 = arith.constant 5.000000e-01 : f32
    %111 = vector.broadcast %cst_74 : f32 to vector<1x128xf32>
    %112 = arith.addf %110, %111 : vector<1x128xf32>
    %c0_75 = arith.constant 0 : index
    %c0_76 = arith.constant 0 : index
    %113 = vector.load %arg6[%c0_75, %c0_76] : memref<1x128xf32, #tpu.memory_space<vmem>>, vector<1x128xf32>
    tpu.vector_store %arg6[%c0_75, %c0_76], %112 {strides = array<i32>} : memref<1x128xf32, #tpu.memory_space<vmem>>, vector<1x128xf32>,
    return
  }
  func.func @transform_0(%arg0: i32) -> (i32, i32, i32) {
    %c0_i32 = arith.constant 0 : i32
    %c0_i32_0 = arith.constant 0 : i32
    %c0_i32_1 = arith.constant 0 : i32
    return %c0_i32, %arg0, %c0_i32_0 : i32, i32, i32
  }
  func.func @transform_1(%arg0: i32) -> (i32, i32) {
    %c0_i32 = arith.constant 0 : i32
    %c0_i32_0 = arith.constant 0 : i32
    %c0_i32_1 = arith.constant 0 : i32
    return %c0_i32, %c0_i32_0 : i32, i32
  }
  func.func @transform_2(%arg0: i32) -> i32 {
    %c0_i32 = arith.constant 0 : i32
    %c0_i32_0 = arith.constant 0 : i32
    return %c0_i32 : i32
  }
  func.func @transform_3(%arg0: i32) -> (i32, i32) {
    %c0_i32 = arith.constant 0 : i32
    %c0_i32_0 = arith.constant 0 : i32
    %c0_i32_1 = arith.constant 0 : i32
    return %c0_i32, %c0_i32_0 : i32, i32
  }
  func.func @transform_4(%arg0: i32) -> i32 {
    %c0_i32 = arith.constant 0 : i32
    %c0_i32_0 = arith.constant 0 : i32
    return %c0_i32 : i32
  }
  func.func @transform_5(%arg0: i32) -> (i32, i32) {
    %c0_i32 = arith.constant 0 : i32
    %c0_i32_0 = arith.constant 0 : i32
    return %arg0, %c0_i32 : i32, i32
  }
}

</mosaic_0001>

<llo_original>
// kernel: mlp_forward.1
$region0: #{mlp_forward.1}
  #allocation0 [shape = 'u32[]', space=smem, size = 0x4, offset = 0x4, fixed_abs, tag = 'smem constant byte address 0x4 - core index']
  #allocation1 [shape = 'u32[144,128]{1,0:T(1,128)}', space=vmem, size = 0x12000, scoped, tag = 'internal scratch']
  #allocation2 [shape = 'f32[1]{0:T(128)S(6)}', space=smem, size = 0x200, scoped, tag = 'scoped memory for mlp_forward.1']
  %s0 = inlined_call_operand.vmem [shape: f32[3,1,128], index: 0, kind: input, shape index: {}]
  %s1 = inlined_call_operand.vmem [shape: f32[4,3], index: 1, kind: input, shape index: {}]
  %s2 = inlined_call_operand.vmem [shape: f32[4], index: 2, kind: input, shape index: {}]
  %s3 = inlined_call_operand.vmem [shape: f32[1,4], index: 3, kind: input, shape index: {}]
  %s4 = inlined_call_operand.<no memory space> [shape: f32[1], index: 4, kind: input, shape index: {}]
  %s5 = inlined_call_operand.vmem [shape: f32[1,128], index: 5, kind: output, shape index: {}]
  %s6 = sld [smem:[#allocation0]]
  $region42: #{mlp_forward.1} parent=0
    _
  %s8 = ssub.s32 1, %s6
  %s9 = scalar_select 0, %s8, %s6
  %10 = sst [smem:[#allocation2]] %s4
  $region1: #{mlp_forward.1} parent=0
    #allocation3 [shape = 'u8[2048]{0}', space=smem, size = 0x800, scoped, tag = 'input window, operand 1, single buffered']
    #allocation4 [shape = 's32[1]{0}', space=sflag, size = 0x4, scoped, tag = 'scoped memory for mlp_forward.1']
    #allocation5 [shape = 'u8[512]{0}', space=smem, size = 0x200, scoped, tag = 'input window, operand 2, single buffered']
    #allocation6 [shape = 's32[1]{0}', space=sflag, size = 0x4, scoped, tag = 'scoped memory for mlp_forward.1']
    #allocation7 [shape = 'u8[512]{0}', space=smem, size = 0x200, scoped, tag = 'input window, operand 3, single buffered']
    %11 = vsyncpa [#allocation4], 0
    %12 = vsyncpa [#allocation6], 0
    // Predicated region
    $region2: #{mlp_forward.1} parent=1 // pred_check
      _
    $region3: #{mlp_forward.1} parent=1 // pred_check_branch
      %14 = sbr.rel (0) target = $region5
    $region4: #{mlp_forward.1} parent=1 // pred_region
      _
    $region5: #{mlp_forward.1} parent=1 // pred_fallthru
      _
    // Predicated region
    $region6: #{mlp_forward.1} parent=1 // pred_check
      _
    $region7: #{mlp_forward.1} parent=1 // pred_check_branch
      %16 = sbr.rel (0) target = $region9
    $region8: #{mlp_forward.1} parent=1 // pred_region
      %s18 = ssub.s32 64, 64
      %19 = vsyncadd [#allocation4], %s18
      %s21 = sshll.u32 %s1, 4
      %s22 = int_to_ptr.vmem [resolvable:$true] %s21
      %24 = dma.vmem_to_smem %s22, 64, [#allocation3], [#allocation4]
    $region9: #{mlp_forward.1} parent=1 // pred_fallthru
      _
    // Predicated region
    $region10: #{mlp_forward.1} parent=1 // pred_check
      _
    $region11: #{mlp_forward.1} parent=1 // pred_check_branch
      %26 = sbr.rel (0) target = $region13
    $region12: #{mlp_forward.1} parent=1 // pred_region
      %s28 = ssub.s32 16, 16
      %29 = vsyncadd [#allocation6], %s28
      %s31 = sshll.u32 %s2, 4
      %s32 = int_to_ptr.vmem [resolvable:$true] %s31
      %34 = dma.vmem_to_smem %s32, 16, [#allocation5], [#allocation6]
    $region13: #{mlp_forward.1} parent=1 // pred_fallthru
      _
    // Predicated region
    $region14: #{mlp_forward.1} parent=1 // pred_check
      _
    $region15: #{mlp_forward.1} parent=1 // pred_check_branch
      %36 = sbr.rel (0) target = $region17
    $region16: #{mlp_forward.1} parent=1 // pred_region
      %s38 = ssub.s32 16, 16
      %39 = vsyncadd [#allocation6], %s38
      %s41 = sshll.u32 %s3, 4
      %s42 = int_to_ptr.vmem [resolvable:$true] %s41
      %44 = dma.vmem_to_smem %s42, 16, [#allocation7], [#allocation6]
    $region17: #{mlp_forward.1} parent=1 // pred_fallthru
      _
    // Predicated region
    $region18: #{mlp_forward.1} parent=1 // pred_check
      _
    $region19: #{mlp_forward.1} parent=1 // pred_check_branch
      %46 = sbr.rel (0) target = $region21
    $region20: #{mlp_forward.1} parent=1 // pred_region
      _
    $region21: #{mlp_forward.1} parent=1 // pred_fallthru
      _
    // Predicated region
    $region22: #{mlp_forward.1} parent=1 // pred_check
      _
    $region23: #{mlp_forward.1} parent=1 // pred_check_branch
      %48 = sbr.rel (0) target = $region25
    $region24: #{mlp_forward.1} parent=1 // pred_region
      %49 = dma.done [#allocation4], 64
    $region25: #{mlp_forward.1} parent=1 // pred_fallthru
      _
    // Predicated region
    $region26: #{mlp_forward.1} parent=1 // pred_check
      _
    $region27: #{mlp_forward.1} parent=1 // pred_check_branch
      %51 = sbr.rel (0) target = $region29
    $region28: #{mlp_forward.1} parent=1 // pred_region
      %52 = dma.done [#allocation6], 16
    $region29: #{mlp_forward.1} parent=1 // pred_fallthru
      _
    // Predicated region
    $region30: #{mlp_forward.1} parent=1 // pred_check
      _
    $region31: #{mlp_forward.1} parent=1 // pred_check_branch
      %54 = sbr.rel (0) target = $region33
    $region32: #{mlp_forward.1} parent=1 // pred_region
      %55 = dma.done [#allocation6], 16
    $region33: #{mlp_forward.1} parent=1 // pred_fallthru
      _
    %56 = sfence
    %s57 = sld [smem:[#allocation3]]
    %v58 = vld [vmem:[%s0] sm:$0x1]
    %v59 = vstv %s57
    %v60 = vmul.f32 %v59, %v58
    %s61 = sld [smem:[#allocation5]]
    %v62 = vstv %s61
    %v63 = vadd.f32 %v60, %v62
    %s64 = sld [smem:[#allocation3 + $0x1]]
    %s65 = scalar_lea.vmem %s0, 1
    %v66 = vld [vmem:[%s65] sm:$0x1]
    %v67 = vstv %s64
    %v68 = vmul.f32 %v67, %v66
    %v69 = vadd.f32 %v63, %v68
    %s70 = sld [smem:[#allocation3 + $0x2]]
    %s71 = scalar_lea.vmem %s0, 2
    %v72 = vld [vmem:[%s71] sm:$0x1]
    %v73 = vstv %s70
    %v74 = vmul.f32 %v73, %v72
    %v75 = vadd.f32 %v69, %v74
    %v76 = vmax.f32 %v75, 0.0
    %s77 = sld [smem:[#allocation7]]
    %v78 = vstv %s77
    %v79 = vmul.f32 %v78, %v76
    %s80 = sld [smem:[#allocation2]]
    %v81 = vstv %s80
    %v82 = vadd.f32 %v79, %v81
    %s83 = sld [smem:[#allocation3 + $0x80]]
    %v84 = vstv %s83
    %v85 = vmul.f32 %v84, %v58
    %s86 = sld [smem:[#allocation5 + $0x1]]
    %v87 = vstv %s86
    %v88 = vadd.f32 %v85, %v87
    %s89 = sld [smem:[#allocation3 + $0x81]]
    %v90 = vstv %s89
    %v91 = vmul.f32 %v90, %v66
    %v92 = vadd.f32 %v88, %v91
    %s93 = sld [smem:[#allocation3 + $0x82]]
    %v94 = vstv %s93
    %v95 = vmul.f32 %v94, %v72
    %v96 = vadd.f32 %v92, %v95
    %v97 = vmax.f32 %v96, 0.0
    %s98 = sld [smem:[#allocation7 + $0x1]]
    %v99 = vstv %s98
    %v100 = vmul.f32 %v99, %v97
    %v101 = vadd.f32 %v82, %v100
    %s102 = sld [smem:[#allocation3 + $0x100]]
    %v103 = vstv %s102
    %v104 = vmul.f32 %v103, %v58
    %s105 = sld [smem:[#allocation5 + $0x2]]
    %v106 = vstv %s105
    %v107 = vadd.f32 %v104, %v106
    %s108 = sld [smem:[#allocation3 + $0x101]]
    %v109 = vstv %s108
    %v110 = vmul.f32 %v109, %v66
    %v111 = vadd.f32 %v107, %v110
    %s112 = sld [smem:[#allocation3 + $0x102]]
    %v113 = vstv %s112
    %v114 = vmul.f32 %v113, %v72
    %v115 = vadd.f32 %v111, %v114
    %v116 = vmax.f32 %v115, 0.0
    %s117 = sld [smem:[#allocation7 + $0x2]]
    %v118 = vstv %s117
    %v119 = vmul.f32 %v118, %v116
    %v120 = vadd.f32 %v101, %v119
    %s121 = sld [smem:[#allocation3 + $0x180]]
    %v122 = vstv %s121
    %v123 = vmul.f32 %v122, %v58
    %s124 = sld [smem:[#allocation5 + $0x3]]
    %v125 = vstv %s124
    %v126 = vadd.f32 %v123, %v125
    %s127 = sld [smem:[#allocation3 + $0x181]]
    %v128 = vstv %s127
    %v129 = vmul.f32 %v128, %v66
    %v130 = vadd.f32 %v126, %v129
    %s131 = sld [smem:[#allocation3 + $0x182]]
    %v132 = vstv %s131
    %v133 = vmul.f32 %v132, %v72
    %v134 = vadd.f32 %v130, %v133
    %v135 = vmax.f32 %v134, 0.0
    %s136 = sld [smem:[#allocation7 + $0x3]]
    %v137 = vstv %s136
    %v138 = vmul.f32 %v137, %v135
    %v139 = vadd.f32 %v120, %v138
    %v140 = vmul.f32 %v139, 0.5
    %v141 = vtanh.pop %v140
    %v142 = vmul.f32 %v141, 0.5
    %v143 = vadd.f32 %v142, 0.5
    %144 = vst [vmem:[%s5] sm:$0x1] %v143
    // Predicated region
    $region34: #{mlp_forward.1} parent=1 // pred_check
      _
    $region35: #{mlp_forward.1} parent=1 // pred_check_branch
      %146 = sbr.rel (0) target = $region37
    $region36: #{mlp_forward.1} parent=1 // pred_region
      _
    $region37: #{mlp_forward.1} parent=1 // pred_fallthru
      _
    // Predicated region
    $region38: #{mlp_forward.1} parent=1 // pred_check
      _
    $region39: #{mlp_forward.1} parent=1 // pred_check_branch
      %148 = sbr.rel (0) target = $region41
    $region40: #{mlp_forward.1} parent=1 // pred_region
      _
    $region41: #{mlp_forward.1} parent=1 // pred_fallthru
      _
    %149 = vsyncpa [#allocation4], 1
    %150 = vsyncpa [#allocation6], 1

</llo_original>
